<compile_context>
chip_gen: v6e
topology: v6e:2x2x1
jax: 0.10.0
libtpu: 0.0.40
codegen_flags: <defaults>
</compile_context>

<pallas_src>
import jax
import jax.numpy as jnp
from jax.experimental import pallas as pl
from jax.experimental.pallas import tpu as pltpu


# -----------------------------------------------------------------------------
# Pallas kernel: q = feat @ coef on the MXU, then exp + clip, lane-dense store
# -----------------------------------------------------------------------------
def _raster_kernel(feat_ref, coef_ref, out_ref):
    # feat_ref: (TP, 8)    pixel features [x'^2, y'^2, x'*y', x', y', 1, 0, 0]
    # coef_ref: (1, 8, TN) gaussian coefficients [A, B, C, D, E, F, 0, 0]
    # out_ref:  (1, TP, TN)
    q = jnp.dot(feat_ref[...], coef_ref[0],
                preferred_element_type=jnp.float32,
                precision=jax.lax.Precision.HIGHEST)        # MXU
    # alpha = exp(q); clip: -relu(-alpha + 0.99) + 0.99 == min(alpha, 0.99)
    out_ref[0] = jnp.minimum(jnp.exp(q), jnp.float32(0.99)).astype(out_ref.dtype)


# -----------------------------------------------------------------------------
# Tile-size / VMEM helpers
# -----------------------------------------------------------------------------
def _largest_divisor(total, cap, quantum):
    """Largest divisor of `total` that is <= cap and a multiple of `quantum`.
    Returns 0 if none exists."""
    best = 0
    d = 1
    while d * d <= total:
        if total % d == 0:
            for c in (d, total // d):
                if c <= cap and c % quantum == 0 and c > best:
                    best = c
        d += 1
    return best


def _vmem_limit_bytes():
    cap = None
    try:
        cap = pltpu.get_tpu_info().vmem_capacity_bytes
    except Exception:
        cap = None
    if cap is None:
        try:
            kind = jax.devices()[0].device_kind.lower()
        except Exception:
            kind = ""
        cap = 64 * 1024 * 1024 if "v7" in kind else 128 * 1024 * 1024
    # leave headroom for compiler scratch; never ask for more than 96 MiB
    return int(min(cap * 3 // 4, 96 * 1024 * 1024))


def _choose_tiles(P, Npad, B, vmem_limit):
    """Pick (tp, tn): pixel (sublane) and gaussian (lane) tile sizes."""
    # Lane tile over gaussians: wide (up to 8 KiB contiguous rows in the
    # output writeback DMA).
    tn = _largest_divisor(Npad, min(Npad, 2048), 128)
    if tn == 0:
        tn = 128   # unreachable (Npad is a multiple of 128), safety only

    # Pixel tile, capped by:
    #  (a) ~4 MiB output block (mem-bound kernels are at roofline well below
    #      this; keeps several grid steps alive for 2-TensorCore chips),
    out_cap = max(8, (4 * 1024 * 1024) // (4 * tn))
    #  (b) VMEM: 2x out(tp,tn) + 2x feat(tp x 128 lane-padded) + 2x coef(8,tn),
    budget = int(vmem_limit * 0.8) - 2 * 8 * tn * 4
    vmem_cap = max(8, budget // (4 * 2 * (tn + 128)))
    #  (c) parallelism: aim for >= 8 grid steps overall.
    steps_bn = B * ((Npad + tn - 1) // tn)
    want_p = max(1, -(-8 // steps_bn))
    par_cap = max(8, -(-P // want_p))

    cap = max(8, min(P, out_cap, vmem_cap, par_cap))
    tp = _largest_divisor(P, cap, 8)              # even tiling when possible
    if tp == 0:                                   # cdiv grid, masked tail block
        tp = max(8, (min(cap, P) // 8) * 8)
    if tp > P:
        tp = P                                    # full-extent block (tiny P)
    return tp, tn


def rasterize_pallas(feat, coef, out_dtype=jnp.float32):
    """feat: [P, 8] f32 pixel features; coef: [B, 8, Npad] f32 -> [B, P, Npad]."""
    P = feat.shape[0]
    B, K, Npad = coef.shape
    assert K == 8 and feat.shape[1] == 8
    assert Npad % 128 == 0, "gaussian axis must be padded to a multiple of 128"

    vmem_limit = _vmem_limit_bytes()
    tp, tn = _choose_tiles(P, Npad, B, vmem_limit)
    grid_p = (P + tp - 1) // tp
    grid_n = Npad // tn

    return pl.pallas_call(
        _raster_kernel,
        out_shape=jax.ShapeDtypeStruct((B, P, Npad), out_dtype),
        grid_spec=pltpu.PrefetchScalarGridSpec(
            num_scalar_prefetch=0,
            grid=(B, grid_p, grid_n),
            in_specs=[
                pl.BlockSpec((tp, 8), lambda b, p, n: (p, 0)),      # pixel feats
                pl.BlockSpec((1, 8, tn), lambda b, p, n: (b, 0, n)),  # gaussians
            ],
            out_specs=pl.BlockSpec((1, tp, tn), lambda b, p, n: (b, p, n)),
        ),
        compiler_params=pltpu.CompilerParams(
            dimension_semantics=("parallel", "parallel", "parallel"),
            vmem_limit_bytes=vmem_limit),
    )(feat, coef)


# -----------------------------------------------------------------------------
# Model setup (mirrors __init__ / prepare_* of the torch module)
# -----------------------------------------------------------------------------
def quaternion_to_rotation_matrix(quats):
    q = quats / jnp.linalg.norm(quats, axis=1, keepdims=True)
    w, x, y, z = q[:, 0], q[:, 1], q[:, 2], q[:, 3]
    R = jnp.stack(
        [1 - 2 * (y ** 2 + z ** 2), 2 * (x * y - z * w), 2 * (x * z + y * w),
         2 * (x * y + z * w), 1 - 2 * (x ** 2 + z ** 2), 2 * (y * z - x * w),
         2 * (x * z - y * w), 2 * (y * z + x * w), 1 - 2 * (x ** 2 + y ** 2)],
        axis=-1).reshape(-1, 3, 3)
    return R


def build_model(data_pack, fx, fy, width, height):
    means = data_pack['means'].astype(jnp.float32)                     # [N, 3]
    quats = data_pack['quats'].astype(jnp.float32)                     # [N, 4]
    scales = jnp.exp(data_pack['scales'].astype(jnp.float32))          # [N, 3]
    opac = jax.nn.sigmoid(data_pack['opacities'].astype(jnp.float32))  # [N, 1]

    N = means.shape[0]
    K = jnp.array([[fx, 0.0, width / 2.0],
                   [0.0, fy, height / 2.0],
                   [0.0, 0.0, 1.0]], jnp.float32)

    ones_n = jnp.ones((N, 1), jnp.float32)
    means_hom = jnp.concatenate([means, ones_n], axis=1)[None]         # [1, N, 4]
    means_hom_tmp = jnp.swapaxes(means_hom, 1, 2)                      # [1, 4, N]

    Rg = quaternion_to_rotation_matrix(quats)                          # [N, 3, 3]
    S = jax.vmap(jnp.diag)(scales)                                     # [N, 3, 3]
    M = Rg @ S
    cov_world = M @ jnp.swapaxes(M, 1, 2)                              # [N, 3, 3]

    tan_fovx = 0.5 * width / fx
    tan_fovy = 0.5 * height / fy
    lim_x = jnp.float32(1.3 * tan_fovx)
    lim_y = jnp.float32(1.3 * tan_fovy)

    # tile_coord (meshgrid indexing='xy'): [..., 0]=x(col), [..., 1]=y(row)
    xs, ys = jnp.meshgrid(jnp.arange(width), jnp.arange(height), indexing='xy')
    tile_coord = jnp.stack([xs, ys], axis=-1).reshape(-1, 2).astype(jnp.float32)

    # Centered, camera-independent per-pixel MXU features [P, 8]:
    #   [x'^2, y'^2, x'*y', x', y', 1, 0, 0]  with x' = x - cx, y' = y - cy
    cx = (width - 1) * 0.5
    cy = (height - 1) * 0.5
    xc = tile_coord[:, 0] - cx
    yc = tile_coord[:, 1] - cy
    one_p = jnp.ones_like(xc)
    zero_p = jnp.zeros_like(xc)
    feat = jnp.stack([xc * xc, yc * yc, xc * yc, xc, yc, one_p, zero_p, zero_p],
                     axis=1)                                           # [P, 8]

    return dict(fx=jnp.float32(fx), fy=jnp.float32(fy), K=K,
                means_hom_tmp=means_hom_tmp, cov_world=cov_world,
                lim_x=lim_x, lim_y=lim_y,
                opacity=opac[:, 0], log_opacity=jnp.log(opac[:, 0]),
                tile_coord=tile_coord, feat=feat,
                cx=jnp.float32(cx), cy=jnp.float32(cy))


# -----------------------------------------------------------------------------
# Projection glue (per-gaussian, O(N))
# -----------------------------------------------------------------------------
def _project(xmat, c):
    means_cam_hom = jnp.swapaxes(jnp.matmul(xmat, c['means_hom_tmp']), 1, 2)  # [B,N,4]
    means_cam = means_cam_hom[:, :, :3] / means_cam_hom[:, :, 3:4]            # [B,N,3]

    R_cam = xmat[:, :3, :3]                                                    # [B,3,3]
    cov_cam = jnp.einsum('bij,njk,blk->bnil', R_cam, c['cov_world'], R_cam,
                         precision=jax.lax.Precision.HIGHEST)                  # [B,N,3,3]

    means_proj_hom = jnp.einsum('bnj,ij->bni', means_cam, c['K'],
                                precision=jax.lax.Precision.HIGHEST)           # [B,N,3]
    means2D = means_proj_hom[:, :, :2] / means_proj_hom[:, :, 2:3]             # [B,N,2]

    xm, ym, z = means_cam[:, :, 0], means_cam[:, :, 1], means_cam[:, :, 2]
    lim_x, lim_y, fx, fy = c['lim_x'], c['lim_y'], c['fx'], c['fy']
    tx = z * jnp.minimum(lim_x, jnp.maximum(-lim_x, xm / z))
    ty = z * jnp.minimum(lim_y, jnp.maximum(-lim_y, ym / z))
    J00 = fx / z
    J02 = -fx * tx / z ** 2
    J11 = fy / z
    J12 = -fy * ty / z ** 2

    cc = cov_cam
    cov2D00 = (J00 * J00 * cc[:, :, 0, 0] + J00 * J02 * cc[:, :, 0, 2]
               + J02 * J00 * cc[:, :, 2, 0] + J02 * J02 * cc[:, :, 2, 2]) + 0.3
    cov2D11 = (J11 * J11 * cc[:, :, 1, 1] + J11 * J12 * cc[:, :, 1, 2]
               + J12 * J11 * cc[:, :, 2, 1] + J12 * J12 * cc[:, :, 2, 2]) + 0.3
    cov2D01 = (J00 * J11 * cc[:, :, 0, 1] + J00 * J12 * cc[:, :, 0, 2]
               + J02 * J11 * cc[:, :, 2, 1] + J02 * J12 * cc[:, :, 2, 2])
    cov2D10 = (J11 * J00 * cc[:, :, 1, 0] + J11 * J02 * cc[:, :, 1, 2]
               + J12 * J00 * cc[:, :, 2, 0] + J12 * J02 * cc[:, :, 2, 2])

    det = cov2D00 * cov2D11 - cov2D01 * cov2D10   # no guard, matches torch
    conic00 = cov2D11 / det
    conic01 = -cov2D01 / det
    conic10 = -cov2D10 / det
    conic11 = cov2D00 / det
    return means2D, conic00, conic01, conic10, conic11


def forward(xmat, c):
    """Pallas-backed forward.  xmat: [B, 4, 4] -> alpha_clip [B, H*W, N, 1]."""
    means2D, c00, c01, c10, c11 = _project(xmat, c)
    B, N = c00.shape

    # Fold constants into degree-2 polynomial coefficients (centered coords):
    #   q = A*x'^2 + Bq*y'^2 + Cq*x'*y' + D*x' + E*y' + F
    A = -0.5 * c00
    Bq = -0.5 * c11
    Cq = -0.5 * (c01 + c10)
    mx = means2D[..., 0] - c['cx']
    my = means2D[..., 1] - c['cy']
    logop = jnp.broadcast_to(c['log_opacity'][None, :], (B, N))
    D = -(2.0 * A * mx + Cq * my)
    E = -(2.0 * Bq * my + Cq * mx)
    F = A * mx * mx + Bq * my * my + Cq * mx * my + logop
    zeros = jnp.zeros((B, N), jnp.float32)
    coef = jnp.stack([A, Bq, Cq, D, E, F, zeros, zeros], axis=1)   # [B, 8, N]

    # Lane-dense output: pad gaussian axis to a multiple of 128 if needed.
    Npad = ((N + 127) // 128) * 128
    if Npad != N:
        coef = jnp.pad(coef, ((0, 0), (0, 0), (0, Npad - N)))

    alpha = rasterize_pallas(c['feat'], coef)                       # [B, P, Npad]
    if Npad != N:
        # TODO(synk): arrange N % 128 == 0 upstream to skip this slice copy
        # (the kernel is store-bound; the slice re-reads/re-writes the result).
        alpha = alpha[:, :, :N]
    return alpha[..., None]


def forward_reference(xmat, c):
    """Pure-JAX reference of the torch forward (for verification)."""
    means2D, c00, c01, c10, c11 = _project(xmat, c)
    dx = c['tile_coord'][None, :, None, :] - means2D[:, None, :, :]   # [B,P,N,2]
    g = jnp.exp(-0.5 * (dx[..., 0] ** 2 * c00[:, None, :]
                        + dx[..., 1] ** 2 * c11[:, None, :]
                        + dx[..., 0] * dx[..., 1] * c01[:, None, :]
                        + dx[..., 0] * dx[..., 1] * c10[:, None, :]))
    alpha = g[..., None] * c['opacity'][None, None, :, None]
    return jnp.minimum(alpha, 0.99)


# -----------------------------------------------------------------------------
if __name__ == "__main__":
    def make_inputs(key, N, B, W, H, fx, fy):
        k1, k2, k3, k4, k5 = jax.random.split(key, 5)
        means = jnp.concatenate(
            [jax.random.uniform(k1, (N, 2), minval=-1.0, maxval=1.0),
             jax.random.uniform(k2, (N, 1), minval=2.0, maxval=5.0)], axis=1)
        scales = jax.random.uniform(k3, (N, 3), minval=-1.5, maxval=-0.5)  # log
        quats = jax.random.normal(k4, (N, 4))
        opacities = jax.random.normal(k5, (N, 1))
        data_pack = dict(means=means, scales=scales, quats=quats,
                         opacities=opacities)
        consts = build_model(data_pack, fx, fy, W, H)

        def rot_y(theta):
            cth, sth = jnp.cos(theta), jnp.sin(theta)
            return jnp.array([[cth, 0.0, sth], [0.0, 1.0, 0.0],
                              [-sth, 0.0, cth]], jnp.float32)

        cams = []
        for b in range(B):
            m = jnp.eye(4, dtype=jnp.float32)
            m = m.at[:3, :3].set(rot_y(0.05 * b))
            m = m.at[:3, 3].set(jnp.array([0.05 * b, -0.02, 1.0 + 0.1 * b],
                                          jnp.float32))
            cams.append(m)
        return jnp.stack(cams), consts

    # Tolerance note: the kernel evaluates an algebraically expanded (MXU)
    # form of the quadratic, so rounding differs slightly from the reference.
    RTOL = ATOL = 1e-3

    key = jax.random.PRNGKey(0)
    k_a, k_b = jax.random.split(key)
    fwd = jax.jit(forward)

    # Case 1: N not a multiple of 128 (padded gaussian axis + final slice).
    B1, N1, W1, H1 = 2, 8, 16, 8
    x1, c1 = make_inputs(k_a, N1, B1, W1, H1, fx=20.0, fy=20.0)
    out1 = jax.block_until_ready(fwd(x1, c1))
    ref1 = jax.block_until_ready(forward_reference(x1, c1))
    assert out1.shape == (B1, H1 * W1, N1, 1), out1.shape
    assert jnp.allclose(out1, ref1, rtol=RTOL, atol=ATOL), \
        float(jnp.max(jnp.abs(out1 - ref1)))

    # Case 2: N a multiple of 128 -> no padding, no post-kernel slice copy.
    B2, N2, W2, H2 = 1, 256, 32, 16
    x2, c2 = make_inputs(k_b, N2, B2, W2, H2, fx=40.0, fy=40.0)
    out2 = jax.block_until_ready(fwd(x2, c2))
    ref2 = jax.block_until_ready(forward_reference(x2, c2))
    assert out2.shape == (B2, H2 * W2, N2, 1), out2.shape
    assert jnp.allclose(out2, ref2, rtol=RTOL, atol=ATOL), \
        float(jnp.max(jnp.abs(out2 - ref2)))

    print("KERNEL_OK")
</pallas_src>

<mosaic_0001>
module attributes {stable_mosaic.version = 11 : i64} {
  func.func @_raster_kernel(%arg0: i32, %arg1: i32, %arg2: i32, %arg3: memref<32x8xf32, #tpu.memory_space<vmem>>, %arg4: memref<1x8x128xf32, #tpu.memory_space<vmem>>, %arg5: memref<1x32x128xf32, #tpu.memory_space<vmem>>) attributes {dimension_semantics = [#tpu.dimension_semantics<parallel>, #tpu.dimension_semantics<parallel>, #tpu.dimension_semantics<parallel>], iteration_bounds = array<i64: 2, 4, 1>, scalar_prefetch = 0 : i64, scratch_operands = 0 : i64, tpu.core_type = #tpu.core_type<tc>, window_params = [{transform_indices = @transform_0, window_bounds = array<i64: 32, 8>}, {transform_indices = @transform_1, window_bounds = array<i64: 1, 8, 128>}, {transform_indices = @transform_2, window_bounds = array<i64: 1, 32, 128>}]} {
    %c0 = arith.constant 0 : index
    %c0_0 = arith.constant 0 : index
    %0 = vector.load %arg3[%c0, %c0_0] : memref<32x8xf32, #tpu.memory_space<vmem>>, vector<32x8xf32>
    %c0_1 = arith.constant 0 : index
    %c0_2 = arith.constant 0 : index
    %c0_3 = arith.constant 0 : index
    %1 = vector.load %arg4[%c0_1, %c0_2, %c0_3] : memref<1x8x128xf32, #tpu.memory_space<vmem>>, vector<1x8x128xf32>
    %2 = vector.shape_cast %1 : vector<1x8x128xf32> to vector<8x128xf32>
    %cst = arith.constant dense<0.000000e+00> : vector<32x128xf32>
    %3 = tpu.matmul %0, %2, %cst {dimension_numbers = #tpu.dot_dimension_numbers<[1], [0], [0], [1], [0, 0, 1, 1], [], []>, precision = #tpu.contract_precision<fp32>} : vector<32x8xf32>, vector<8x128xf32>, vector<32x128xf32> -> vector<32x128xf32>
    %4 = math.exp %3 : vector<32x128xf32>
    %cst_4 = arith.constant 9.900000e-01 : f32
    %5 = vector.broadcast %cst_4 : f32 to vector<32x128xf32>
    %6 = arith.minimumf %4, %5 : vector<32x128xf32>
    %c0_5 = arith.constant 0 : index
    %c0_6 = arith.constant 0 : index
    %c0_7 = arith.constant 0 : index
    %7 = vector.load %arg5[%c0_5, %c0_6, %c0_7] : memref<1x32x128xf32, #tpu.memory_space<vmem>>, vector<1x32x128xf32>
    %8 = vector.shape_cast %7 : vector<1x32x128xf32> to vector<32x128xf32>
    %9 = vector.shape_cast %6 : vector<32x128xf32> to vector<1x32x128xf32>
    tpu.vector_store %arg5[%c0_5, %c0_6, %c0_7], %9 {strides = array<i32>} : memref<1x32x128xf32, #tpu.memory_space<vmem>>, vector<1x32x128xf32>,
    return
  }
  func.func @transform_0(%arg0: i32, %arg1: i32, %arg2: i32) -> (i32, i32) {
    %c0_i32 = arith.constant 0 : i32
    %c0_i32_0 = arith.constant 0 : i32
    return %arg1, %c0_i32 : i32, i32
  }
  func.func @transform_1(%arg0: i32, %arg1: i32, %arg2: i32) -> (i32, i32, i32) {
    %c0_i32 = arith.constant 0 : i32
    %c0_i32_0 = arith.constant 0 : i32
    return %arg0, %c0_i32, %arg2 : i32, i32, i32
  }
  func.func @transform_2(%arg0: i32, %arg1: i32, %arg2: i32) -> (i32, i32, i32) {
    %c0_i32 = arith.constant 0 : i32
    return %arg0, %arg1, %arg2 : i32, i32, i32
  }
}

</mosaic_0001>

<llo_original>
// kernel: forward.1
$region0: #{forward.1}
  #allocation0 [shape = 'u32[]', space=smem, size = 0x4, offset = 0x4, fixed_abs, tag = 'smem constant byte address 0x4 - core index']
  #allocation1 [shape = 'u32[144,128]{1,0:T(1,128)}', space=vmem, size = 0x12000, scoped, tag = 'internal scratch']
  %s0 = inlined_call_operand.vmem [shape: f32[128,8], index: 0, kind: input, shape index: {}]
  %s1 = inlined_call_operand.vmem [shape: f32[2,8,128], index: 1, kind: input, shape index: {}]
  %s2 = inlined_call_operand.vmem [shape: f32[2,128,128], index: 2, kind: output, shape index: {}]
  %s3 = sld [smem:[#allocation0]]
  $region41: #{forward.1} parent=0
    _
  %s5 = ssub.s32 1, %s3
  %s6 = scalar_select 0, %s5, %s3
  loop: start=0, step=1, limit=10
  $region2: #{forward.1} parent=0 // loop_pre_header
    _
  $region3: #{forward.1} parent=0 // loop_header
    %s8 = sphi 0, %s12
    %p9 = scmp.ge.s32.totalorder %s8, 10
    %s15 = sphi 0, %s34
    %s16 = sphi 0, %s30
    %s17 = sphi 0, %s26
    %s18 = sphi 0, %s15
    %s19 = sphi 0, %s16
    %s20 = sphi 0, %s17
    %s21 = sphi 0, %s18
    %s22 = sphi 0, %s19
    %s23 = sphi 0, %s20
    %s37 = sphi 0, %s39
    %s40 = sphi 0, %s37
    %s41 = sphi 0, %s40
    %s57 = sphi 0, %s41
    %s65 = sphi 0, %s67
    %s68 = sphi 0, %s65
    %s69 = sphi 0, %s68
    %s85 = sphi 0, %s69
    %s95 = sphi 0, %s97
    %s98 = sphi 0, %s95
    %s99 = sphi 0, %s98
    %s115 = sphi 0, %s99
  $region4: #{forward.1} parent=0 // loop_header_branch
    %11 = sbr.rel (%p9) target = $region8
  $region5: #{forward.1} parent=0 // loop_body
    %s13 = ssub.s32 %s8, 1
    %s14 = ssub.s32 %s8, 2
    %s24 = sadd.s32 1, %s17
    %p25 = scmp.ge.s32.totalorder %s24, 1
    %s26 = scalar_select %p25, 0, %s24
    %s27 = sadd.s32 1, %s16
    %s28 = scalar_select %p25, %s27, %s16
    %p29 = scmp.ge.s32.totalorder %s28, 4
    %s30 = scalar_select %p29, 0, %s28
    %s31 = sadd.s32 1, %s15
    %s32 = scalar_select %p29, %s31, %s15
    %p33 = scmp.ge.s32.totalorder %s32, 2
    %s34 = scalar_select %p33, 0, %s32
    %s35 = ssub.s32 %s16, %s30
    %p36 = scmp.eq.s32.totalorder %s35, 0
    %s38 = sadd.s32 %s37, 1
    %s39 = scalar_select %p36, %s37, %s38
    %p42 = pneg %p36
    %p43 = scmp.eq.s32.totalorder %s8, 7
    %p44 = por %p42, %p43
    %p45 = scmp.ne.s32.totalorder %s37, %s40
    %p46 = scmp.eq.s32.totalorder %s8, 0
    %p47 = por %p45, %p46
    %p48 = scmp.ne.s32.totalorder %s37, %s40
    %p49 = scmp.eq.s32.totalorder %s13, 7
    %p50 = por %p48, %p49
    %p51 = scmp.ne.s32.totalorder %s40, %s41
    %p52 = scmp.eq.s32.totalorder %s13, 0
    %p53 = por %p51, %p52
    %p54 = scmp.ne.s32.totalorder %s40, %s41
    %p55 = scmp.eq.s32.totalorder %s14, 7
    %p56 = por %p54, %p55
    %p58 = scmp.ne.s32.totalorder %s41, %s57
    %p59 = scmp.eq.s32.totalorder %s14, 0
    %p60 = por %p58, %p59
    %s61 = ssub.s32 %s15, %s34
    %s62 = ssub.s32 %s17, %s26
    %s63 = sor.u32 %s61, %s62
    %p64 = scmp.eq.s32.totalorder %s63, 0
    %s66 = sadd.s32 %s65, 1
    %s67 = scalar_select %p64, %s65, %s66
    %p70 = pneg %p64
    %p71 = scmp.eq.s32.totalorder %s8, 7
    %p72 = por %p70, %p71
    %p73 = scmp.ne.s32.totalorder %s65, %s68
    %p74 = scmp.eq.s32.totalorder %s8, 0
    %p75 = por %p73, %p74
    %p76 = scmp.ne.s32.totalorder %s65, %s68
    %p77 = scmp.eq.s32.totalorder %s13, 7
    %p78 = por %p76, %p77
    %p79 = scmp.ne.s32.totalorder %s68, %s69
    %p80 = scmp.eq.s32.totalorder %s13, 0
    %p81 = por %p79, %p80
    %p82 = scmp.ne.s32.totalorder %s68, %s69
    %p83 = scmp.eq.s32.totalorder %s14, 7
    %p84 = por %p82, %p83
    %p86 = scmp.ne.s32.totalorder %s69, %s85
    %p87 = scmp.eq.s32.totalorder %s14, 0
    %p88 = por %p86, %p87
    %s89 = ssub.s32 %s15, %s34
    %s90 = ssub.s32 %s16, %s30
    %s91 = sor.u32 %s89, %s90
    %s92 = ssub.s32 %s17, %s26
    %s93 = sor.u32 %s91, %s92
    %p94 = scmp.eq.s32.totalorder %s93, 0
    %s96 = sadd.s32 %s95, 1
    %s97 = scalar_select %p94, %s95, %s96
    %p100 = pneg %p94
    %p101 = scmp.eq.s32.totalorder %s8, 7
    %p102 = por %p100, %p101
    %p103 = scmp.ne.s32.totalorder %s95, %s98
    %p104 = scmp.eq.s32.totalorder %s8, 0
    %p105 = por %p103, %p104
    %p106 = scmp.ne.s32.totalorder %s95, %s98
    %p107 = scmp.eq.s32.totalorder %s13, 7
    %p108 = por %p106, %p107
    %p109 = scmp.ne.s32.totalorder %s98, %s99
    %p110 = scmp.eq.s32.totalorder %s13, 0
    %p111 = por %p109, %p110
    %p112 = scmp.ne.s32.totalorder %s98, %s99
    %p113 = scmp.eq.s32.totalorder %s14, 7
    %p114 = por %p112, %p113
    %p116 = scmp.ne.s32.totalorder %s99, %s115
    %p117 = scmp.eq.s32.totalorder %s14, 0
    %p118 = por %p116, %p117
    %p119 = scmp.le.s32.totalorder 1, %s8
    %p120 = scmp.lt.s32.totalorder %s8, 9
    %p121 = pnand %p119, %p120
    %p122 = pneg %p121
    // Predicated region
    $region9: #{forward.1} parent=5 // pred_check
      _
    $region10: #{forward.1} parent=5 // pred_check_branch
      %124 = sbr.rel (%p121) target = $region12
    $region11: #{forward.1} parent=5 // pred_region
      %s125 = ssub.s32 %s8, 1
    $region12: #{forward.1} parent=5 // pred_fallthru
      _
    %p126 = scmp.lt.s32.totalorder %s8, 8
    // Predicated region
    $region13: #{forward.1} parent=5 // pred_check
      %p127 = pneg %p126
    $region14: #{forward.1} parent=5 // pred_check_branch
      %129 = sbr.rel (%p127) target = $region16
    $region15: #{forward.1} parent=5 // pred_region
      // Predicated region
      $region17: #{forward.1} parent=15 // pred_check
        %p130 = pneg %p47
      $region18: #{forward.1} parent=15 // pred_check_branch
        %132 = sbr.rel (%p130) target = $region20
      $region19: #{forward.1} parent=15 // pred_region
        %s133 = smul.u32 4, %s16
        %p134 = scmp.lt.s32.totalorder %s133, 15
        %s135 = scalar_select %p134, %s133, 15
        %s136 = smul.addr %s135, 8
        %s137 = scalar_lea.vmem %s0, %s136
        %s138 = smul.u32 4, %s16
      $region20: #{forward.1} parent=15 // pred_fallthru
        _
      // Predicated region
      $region21: #{forward.1} parent=15 // pred_check
        %p139 = pneg %p75
      $region22: #{forward.1} parent=15 // pred_check_branch
        %141 = sbr.rel (%p139) target = $region24
      $region23: #{forward.1} parent=15 // pred_region
        %p142 = scmp.lt.s32.totalorder %s15, 1
        %s143 = scalar_select %p142, %s15, 1
        %p144 = scmp.lt.s32.totalorder %s17, 0
        %s145 = scalar_select %p144, %s17, 0
        %s146 = sadd.s32 %s145, %s143
        %s147 = smul.addr %s146, 8
        %s148 = scalar_lea.vmem %s1, %s147
      $region24: #{forward.1} parent=15 // pred_fallthru
        _
    $region16: #{forward.1} parent=5 // pred_fallthru
      _
    %p149 = scmp.le.s32.totalorder 1, %s8
    %p150 = scmp.lt.s32.totalorder %s8, 9
    %p151 = pnand %p149, %p150
    %p152 = pneg %p151
    // Predicated region
    $region25: #{forward.1} parent=5 // pred_check
      _
    $region26: #{forward.1} parent=5 // pred_check_branch
      %154 = sbr.rel (%p151) target = $region28
    $region27: #{forward.1} parent=5 // pred_region
      %s155 = ssub.s32 %s8, 1
      %s156 = smul.u32 4, %s19
      %p157 = scmp.lt.s32.totalorder %s156, 15
      %s158 = scalar_select %p157, %s156, 15
      %s159 = smul.addr %s158, 8
      %s160 = scalar_lea.vmem %s0, %s159
      %p161 = pneg %p53
      %p162 = pneg %p50
      %p163 = scmp.lt.s32.totalorder %s18, 1
      %s164 = scalar_select %p163, %s18, 1
      %p165 = scmp.lt.s32.totalorder %s20, 0
      %s166 = scalar_select %p165, %s20, 0
      %s167 = sadd.s32 %s166, %s164
      %s168 = smul.addr %s167, 8
      %s169 = scalar_lea.vmem %s1, %s168
      %p170 = pneg %p81
      %p171 = pneg %p78
      %p172 = pneg %p111
      %p173 = pneg %p108
      %s174 = smul.u32 4, %s19
      %p175 = scmp.lt.s32.totalorder %s18, 1
      %s176 = scalar_select %p175, %s18, 1
      %p177 = scmp.lt.s32.totalorder %s174, 15
      %s178 = scalar_select %p177, %s174, 15
      %p179 = scmp.lt.s32.totalorder %s20, 0
      %s180 = scalar_select %p179, %s20, 0
      %s181 = sadd.s32 %s180, %s178
      %s182 = smul.addr %s176, 16
      %s183 = sadd.s32 %s181, %s182
      %s184 = smul.addr %s183, 8
      %s185 = scalar_lea.vmem %s2, %s184
      %s186 = smul.u32 4, %s19
      %p187 = scmp.lt.s32.totalorder %s186, 15
      %s188 = scalar_select %p187, %s186, 15
      %s189 = smul.addr %s188, 8
      %s190 = scalar_lea.vmem %s0, %s189
      %s191 = smul.u32 4, %s19
      %p192 = scmp.lt.s32.totalorder %s18, 1
      %s193 = scalar_select %p192, %s18, 1
      %p194 = scmp.lt.s32.totalorder %s20, 0
      %s195 = scalar_select %p194, %s20, 0
      %s196 = sadd.s32 %s195, %s193
      %s197 = smul.addr %s196, 8
      %s198 = scalar_lea.vmem %s1, %s197
      %s199 = smul.u32 4, %s19
      %p200 = scmp.lt.s32.totalorder %s18, 1
      %s201 = scalar_select %p200, %s18, 1
      %p202 = scmp.lt.s32.totalorder %s199, 15
      %s203 = scalar_select %p202, %s199, 15
      %p204 = scmp.lt.s32.totalorder %s20, 0
      %s205 = scalar_select %p204, %s20, 0
      %s206 = sadd.s32 %s205, %s203
      %s207 = smul.addr %s201, 16
      %s208 = sadd.s32 %s206, %s207
      %s209 = smul.addr %s208, 8
      %s210 = scalar_lea.vmem %s2, %s209
      %s211 = smul.u32 4, %s19
      %v212 = vld [vmem:[%s190] sm:$0xff]
      %v213 = vld [vmem:[%s190 + $0x8] sm:$0xff]
      %v214 = vld [vmem:[%s190 + $0x10] sm:$0xff]
      %v215 = vld [vmem:[%s190 + $0x18] sm:$0xff]
      %v216 = vld [vmem:[%s198] sm:$0xff]
      %vm217 = vcmask 64512
      %v219 = vsel %vm217, %v212, 0
      %v222 = vsel %vm217, %v213, 0
      %v225 = vsel %vm217, %v214, 0
      %v228 = vsel %vm217, %v215, 0
      %230 = vmatprep.subr.mxu0 0.0
      %231 = vmatpush1.msra.mxu0 0.0
      %232 = vmatprep.subr.mxu0 0.0
      %233 = vmatpush1.msra.mxu0 0.0
      %234 = vmatprep.subr.mxu0 0.0
      %235 = vmatpush1.msra.mxu0 0.0
      %236 = vmatprep.subr.mxu0 0.0
      %237 = vmatpush1.msra.mxu0 0.0
      %238 = vmatprep.subr.mxu0 0.0
      %239 = vmatpush1.msra.mxu0 0.0
      %240 = vmatprep.subr.mxu0 0.0
      %241 = vmatpush1.msra.mxu0 0.0
      %242 = vmatprep.subr.mxu0 0.0
      %243 = vmatpush1.msra.mxu0 0.0
      %244 = vmatprep.subr.mxu0 0.0
      %245 = vmatpush1.msra.mxu0 0.0
      %246 = vmatprep.subr.mxu0 0.0
      %247 = vmatpush1.msra.mxu0 0.0
      %248 = vmatprep.subr.mxu0 0.0
      %249 = vmatpush1.msra.mxu0 0.0
      %250 = vmatprep.subr.mxu0 0.0
      %251 = vmatpush1.msra.mxu0 0.0
      %252 = vmatprep.subr.mxu0 0.0
      %253 = vmatpush1.msra.mxu0 0.0
      %254 = vmatprep.subr.mxu0 0.0
      %255 = vmatpush1.msra.mxu0 0.0
      %256 = vmatprep.subr.mxu0 0.0
      %257 = vmatpush1.msra.mxu0 0.0
      %258 = vmatprep.subr.mxu0 0.0
      %259 = vmatpush1.msra.mxu0 0.0
      %260 = vmatprep.subr.mxu0 0.0
      %v261 = vand.u32 %v216, 4294901760
      %262 = vmatpush1.msra.mxu0 %v261
      %263 = vmatprep.subr.mxu0 0.0
      %264 = vmatpush2.msra.mxu0 0.0
      %265 = vmatprep.subr.mxu0 0.0
      %266 = vmatpush2.msra.mxu0 0.0
      %267 = vmatprep.subr.mxu0 0.0
      %268 = vmatpush2.msra.mxu0 0.0
      %269 = vmatprep.subr.mxu0 0.0
      %270 = vmatpush2.msra.mxu0 0.0
      %271 = vmatprep.subr.mxu0 0.0
      %272 = vmatpush2.msra.mxu0 0.0
      %273 = vmatprep.subr.mxu0 0.0
      %274 = vmatpush2.msra.mxu0 0.0
      %275 = vmatprep.subr.mxu0 0.0
      %276 = vmatpush2.msra.mxu0 0.0
      %277 = vmatprep.subr.mxu0 0.0
      %278 = vmatpush2.msra.mxu0 0.0
      %279 = vmatprep.subr.mxu0 0.0
      %280 = vmatpush2.msra.mxu0 0.0
      %281 = vmatprep.subr.mxu0 0.0
      %282 = vmatpush2.msra.mxu0 0.0
      %283 = vmatprep.subr.mxu0 0.0
      %284 = vmatpush2.msra.mxu0 0.0
      %285 = vmatprep.subr.mxu0 0.0
      %286 = vmatpush2.msra.mxu0 0.0
      %287 = vmatprep.subr.mxu0 0.0
      %288 = vmatpush2.msra.mxu0 0.0
      %289 = vmatprep.subr.mxu0 0.0
      %290 = vmatpush2.msra.mxu0 0.0
      %291 = vmatprep.subr.mxu0 0.0
      %292 = vmatpush2.msra.mxu0 0.0
      %293 = vmatprep.subr.mxu0 0.0
      %294 = vmatpush2.msra.mxu0 0.0
      %295 = vmatprep.mubr.f32.mxu0 0.0
      %v296 = vand.u32 %v219, 4294901760
      %v297 = vsub.f32 %v219, %v296
      %v298 = vand.u32 %v297, 4294901760
      %v299 = vsub.f32 %v297, %v298
      %v300 = vand.u32 %v299, 4294901760
      %301 = vmatmul.mubr.f32.gmra.mxu0 %v300
      %v302 = vpop.f32.mrf.mxu0
      %v303 = vadd.f32 0.0, %v302
      %v304 = vpop.f32.mrf.mxu0
      %305 = vmatprep.mubr.f32.mxu0 0.0
      %v306 = vand.u32 %v222, 4294901760
      %v307 = vsub.f32 %v222, %v306
      %v308 = vand.u32 %v307, 4294901760
      %v309 = vsub.f32 %v307, %v308
      %v310 = vand.u32 %v309, 4294901760
      %311 = vmatmul.mubr.f32.gmra.mxu0 %v310
      %v312 = vpop.f32.mrf.mxu0
      %v313 = vadd.f32 0.0, %v312
      %v314 = vpop.f32.mrf.mxu0
      %315 = vmatprep.mubr.f32.mxu0 0.0
      %v316 = vand.u32 %v225, 4294901760
      %v317 = vsub.f32 %v225, %v316
      %v318 = vand.u32 %v317, 4294901760
      %v319 = vsub.f32 %v317, %v318
      %v320 = vand.u32 %v319, 4294901760
      %321 = vmatmul.mubr.f32.gmra.mxu0 %v320
      %v322 = vpop.f32.mrf.mxu0
      %v323 = vadd.f32 0.0, %v322
      %v324 = vpop.f32.mrf.mxu0
      %325 = vmatprep.mubr.f32.mxu0 0.0
      %v326 = vand.u32 %v228, 4294901760
      %v327 = vsub.f32 %v228, %v326
      %v328 = vand.u32 %v327, 4294901760
      %v329 = vsub.f32 %v327, %v328
      %v330 = vand.u32 %v329, 4294901760
      %331 = vmatmul.mubr.f32.gmra.mxu0 %v330
      %v332 = vpop.f32.mrf.mxu0
      %v333 = vadd.f32 0.0, %v332
      %v334 = vpop.f32.mrf.mxu0
      %335 = vdwg.mxu0
      %336 = vmatprep.subr.mxu0 0.0
      %337 = vmatpush1.msra.mxu0 0.0
      %338 = vmatprep.subr.mxu0 0.0
      %339 = vmatpush1.msra.mxu0 0.0
      %340 = vmatprep.subr.mxu0 0.0
      %341 = vmatpush1.msra.mxu0 0.0
      %342 = vmatprep.subr.mxu0 0.0
      %343 = vmatpush1.msra.mxu0 0.0
      %344 = vmatprep.subr.mxu0 0.0
      %345 = vmatpush1.msra.mxu0 0.0
      %346 = vmatprep.subr.mxu0 0.0
      %347 = vmatpush1.msra.mxu0 0.0
      %348 = vmatprep.subr.mxu0 0.0
      %349 = vmatpush1.msra.mxu0 0.0
      %350 = vmatprep.subr.mxu0 0.0
      %351 = vmatpush1.msra.mxu0 0.0
      %352 = vmatprep.subr.mxu0 0.0
      %353 = vmatpush1.msra.mxu0 0.0
      %354 = vmatprep.subr.mxu0 0.0
      %355 = vmatpush1.msra.mxu0 0.0
      %356 = vmatprep.subr.mxu0 0.0
      %357 = vmatpush1.msra.mxu0 0.0
      %358 = vmatprep.subr.mxu0 0.0
      %359 = vmatpush1.msra.mxu0 0.0
      %360 = vmatprep.subr.mxu0 0.0
      %361 = vmatpush1.msra.mxu0 0.0
      %362 = vmatprep.subr.mxu0 0.0
      %363 = vmatpush1.msra.mxu0 0.0
      %364 = vmatprep.subr.mxu0 0.0
      %365 = vmatpush1.msra.mxu0 0.0
      %366 = vmatprep.subr.mxu0 0.0
      %v367 = vand.u32 %v216, 4294901760
      %v368 = vsub.f32 %v216, %v367
      %v369 = vand.u32 %v368, 4294901760
      %v370 = vsub.f32 %v368, %v369
      %v371 = vand.u32 %v370, 4294901760
      %372 = vmatpush1.msra.mxu0 %v371
      %373 = vmatprep.subr.mxu0 0.0
      %374 = vmatpush2.msra.mxu0 0.0
      %375 = vmatprep.subr.mxu0 0.0
      %376 = vmatpush2.msra.mxu0 0.0
      %377 = vmatprep.subr.mxu0 0.0
      %378 = vmatpush2.msra.mxu0 0.0
      %379 = vmatprep.subr.mxu0 0.0
      %380 = vmatpush2.msra.mxu0 0.0
      %381 = vmatprep.subr.mxu0 0.0
      %382 = vmatpush2.msra.mxu0 0.0
      %383 = vmatprep.subr.mxu0 0.0
      %384 = vmatpush2.msra.mxu0 0.0
      %385 = vmatprep.subr.mxu0 0.0
      %386 = vmatpush2.msra.mxu0 0.0
      %387 = vmatprep.subr.mxu0 0.0
      %388 = vmatpush2.msra.mxu0 0.0
      %389 = vmatprep.subr.mxu0 0.0
      %390 = vmatpush2.msra.mxu0 0.0
      %391 = vmatprep.subr.mxu0 0.0
      %392 = vmatpush2.msra.mxu0 0.0
      %393 = vmatprep.subr.mxu0 0.0
      %394 = vmatpush2.msra.mxu0 0.0
      %395 = vmatprep.subr.mxu0 0.0
      %396 = vmatpush2.msra.mxu0 0.0
      %397 = vmatprep.subr.mxu0 0.0
      %398 = vmatpush2.msra.mxu0 0.0
      %399 = vmatprep.subr.mxu0 0.0
      %400 = vmatpush2.msra.mxu0 0.0
      %401 = vmatprep.subr.mxu0 0.0
      %402 = vmatpush2.msra.mxu0 0.0
      %403 = vmatprep.subr.mxu0 0.0
      %404 = vmatpush2.msra.mxu0 0.0
      %405 = vmatprep.mubr.f32.mxu0 0.0
      %v406 = vand.u32 %v219, 4294901760
      %407 = vmatmul.mubr.f32.gmra.mxu0 %v406
      %v408 = vpop.f32.mrf.mxu0
      %v409 = vadd.f32 %v303, %v408
      %v410 = vpop.f32.mrf.mxu0
      %411 = vmatprep.mubr.f32.mxu0 0.0
      %v412 = vand.u32 %v222, 4294901760
      %413 = vmatmul.mubr.f32.gmra.mxu0 %v412
      %v414 = vpop.f32.mrf.mxu0
      %v415 = vadd.f32 %v313, %v414
      %v416 = vpop.f32.mrf.mxu0
      %417 = vmatprep.mubr.f32.mxu0 0.0
      %v418 = vand.u32 %v225, 4294901760
      %419 = vmatmul.mubr.f32.gmra.mxu0 %v418
      %v420 = vpop.f32.mrf.mxu0
      %v421 = vadd.f32 %v323, %v420
      %v422 = vpop.f32.mrf.mxu0
      %423 = vmatprep.mubr.f32.mxu0 0.0
      %v424 = vand.u32 %v228, 4294901760
      %425 = vmatmul.mubr.f32.gmra.mxu0 %v424
      %v426 = vpop.f32.mrf.mxu0
      %v427 = vadd.f32 %v333, %v426
      %v428 = vpop.f32.mrf.mxu0
      %429 = vdwg.mxu0
      %430 = vmatprep.subr.mxu0 0.0
      %431 = vmatpush1.msra.mxu0 0.0
      %432 = vmatprep.subr.mxu0 0.0
      %433 = vmatpush1.msra.mxu0 0.0
      %434 = vmatprep.subr.mxu0 0.0
      %435 = vmatpush1.msra.mxu0 0.0
      %436 = vmatprep.subr.mxu0 0.0
      %437 = vmatpush1.msra.mxu0 0.0
      %438 = vmatprep.subr.mxu0 0.0
      %439 = vmatpush1.msra.mxu0 0.0
      %440 = vmatprep.subr.mxu0 0.0
      %441 = vmatpush1.msra.mxu0 0.0
      %442 = vmatprep.subr.mxu0 0.0
      %443 = vmatpush1.msra.mxu0 0.0
      %444 = vmatprep.subr.mxu0 0.0
      %445 = vmatpush1.msra.mxu0 0.0
      %446 = vmatprep.subr.mxu0 0.0
      %447 = vmatpush1.msra.mxu0 0.0
      %448 = vmatprep.subr.mxu0 0.0
      %449 = vmatpush1.msra.mxu0 0.0
      %450 = vmatprep.subr.mxu0 0.0
      %451 = vmatpush1.msra.mxu0 0.0
      %452 = vmatprep.subr.mxu0 0.0
      %453 = vmatpush1.msra.mxu0 0.0
      %454 = vmatprep.subr.mxu0 0.0
      %455 = vmatpush1.msra.mxu0 0.0
      %456 = vmatprep.subr.mxu0 0.0
      %457 = vmatpush1.msra.mxu0 0.0
      %458 = vmatprep.subr.mxu0 0.0
      %459 = vmatpush1.msra.mxu0 0.0
      %460 = vmatprep.subr.mxu0 0.0
      %v461 = vand.u32 %v216, 4294901760
      %v462 = vsub.f32 %v216, %v461
      %463 = vmatpush1.msra.mxu0 %v462
      %464 = vmatprep.subr.mxu0 0.0
      %465 = vmatpush2.msra.mxu0 0.0
      %466 = vmatprep.subr.mxu0 0.0
      %467 = vmatpush2.msra.mxu0 0.0
      %468 = vmatprep.subr.mxu0 0.0
      %469 = vmatpush2.msra.mxu0 0.0
      %470 = vmatprep.subr.mxu0 0.0
      %471 = vmatpush2.msra.mxu0 0.0
      %472 = vmatprep.subr.mxu0 0.0
      %473 = vmatpush2.msra.mxu0 0.0
      %474 = vmatprep.subr.mxu0 0.0
      %475 = vmatpush2.msra.mxu0 0.0
      %476 = vmatprep.subr.mxu0 0.0
      %477 = vmatpush2.msra.mxu0 0.0
      %478 = vmatprep.subr.mxu0 0.0
      %479 = vmatpush2.msra.mxu0 0.0
      %480 = vmatprep.subr.mxu0 0.0
      %481 = vmatpush2.msra.mxu0 0.0
      %482 = vmatprep.subr.mxu0 0.0
      %483 = vmatpush2.msra.mxu0 0.0
      %484 = vmatprep.subr.mxu0 0.0
      %485 = vmatpush2.msra.mxu0 0.0
      %486 = vmatprep.subr.mxu0 0.0
      %487 = vmatpush2.msra.mxu0 0.0
      %488 = vmatprep.subr.mxu0 0.0
      %489 = vmatpush2.msra.mxu0 0.0
      %490 = vmatprep.subr.mxu0 0.0
      %491 = vmatpush2.msra.mxu0 0.0
      %492 = vmatprep.subr.mxu0 0.0
      %493 = vmatpush2.msra.mxu0 0.0
      %494 = vmatprep.subr.mxu0 0.0
      %495 = vmatpush2.msra.mxu0 0.0
      %496 = vmatprep.mubr.f32.mxu0 0.0
      %v497 = vand.u32 %v219, 4294901760
      %v498 = vsub.f32 %v219, %v497
      %499 = vmatmul.mubr.f32.gmra.mxu0 %v498
      %v500 = vpop.f32.mrf.mxu0
      %v501 = vadd.f32 %v409, %v500
      %v502 = vpop.f32.mrf.mxu0
      %503 = vmatprep.mubr.f32.mxu0 0.0
      %v504 = vand.u32 %v222, 4294901760
      %v505 = vsub.f32 %v222, %v504
      %506 = vmatmul.mubr.f32.gmra.mxu0 %v505
      %v507 = vpop.f32.mrf.mxu0
      %v508 = vadd.f32 %v415, %v507
      %v509 = vpop.f32.mrf.mxu0
      %510 = vmatprep.mubr.f32.mxu0 0.0
      %v511 = vand.u32 %v225, 4294901760
      %v512 = vsub.f32 %v225, %v511
      %513 = vmatmul.mubr.f32.gmra.mxu0 %v512
      %v514 = vpop.f32.mrf.mxu0
      %v515 = vadd.f32 %v421, %v514
      %v516 = vpop.f32.mrf.mxu0
      %517 = vmatprep.mubr.f32.mxu0 0.0
      %v518 = vand.u32 %v228, 4294901760
      %v519 = vsub.f32 %v228, %v518
      %520 = vmatmul.mubr.f32.gmra.mxu0 %v519
      %v521 = vpop.f32.mrf.mxu0
      %v522 = vadd.f32 %v427, %v521
      %v523 = vpop.f32.mrf.mxu0
      %524 = vdwg.mxu0
      %525 = vmatprep.subr.mxu0 0.0
      %526 = vmatpush1.msra.mxu0 0.0
      %527 = vmatprep.subr.mxu0 0.0
      %528 = vmatpush1.msra.mxu0 0.0
      %529 = vmatprep.subr.mxu0 0.0
      %530 = vmatpush1.msra.mxu0 0.0
      %531 = vmatprep.subr.mxu0 0.0
      %532 = vmatpush1.msra.mxu0 0.0
      %533 = vmatprep.subr.mxu0 0.0
      %534 = vmatpush1.msra.mxu0 0.0
      %535 = vmatprep.subr.mxu0 0.0
      %536 = vmatpush1.msra.mxu0 0.0
      %537 = vmatprep.subr.mxu0 0.0
      %538 = vmatpush1.msra.mxu0 0.0
      %539 = vmatprep.subr.mxu0 0.0
      %540 = vmatpush1.msra.mxu0 0.0
      %541 = vmatprep.subr.mxu0 0.0
      %542 = vmatpush1.msra.mxu0 0.0
      %543 = vmatprep.subr.mxu0 0.0
      %544 = vmatpush1.msra.mxu0 0.0
      %545 = vmatprep.subr.mxu0 0.0
      %546 = vmatpush1.msra.mxu0 0.0
      %547 = vmatprep.subr.mxu0 0.0
      %548 = vmatpush1.msra.mxu0 0.0
      %549 = vmatprep.subr.mxu0 0.0
      %550 = vmatpush1.msra.mxu0 0.0
      %551 = vmatprep.subr.mxu0 0.0
      %552 = vmatpush1.msra.mxu0 0.0
      %553 = vmatprep.subr.mxu0 0.0
      %554 = vmatpush1.msra.mxu0 0.0
      %555 = vmatprep.subr.mxu0 0.0
      %v556 = vand.u32 %v216, 4294901760
      %557 = vmatpush1.msra.mxu0 %v556
      %558 = vmatprep.subr.mxu0 0.0
      %559 = vmatpush2.msra.mxu0 0.0
      %560 = vmatprep.subr.mxu0 0.0
      %561 = vmatpush2.msra.mxu0 0.0
      %562 = vmatprep.subr.mxu0 0.0
      %563 = vmatpush2.msra.mxu0 0.0
      %564 = vmatprep.subr.mxu0 0.0
      %565 = vmatpush2.msra.mxu0 0.0
      %566 = vmatprep.subr.mxu0 0.0
      %567 = vmatpush2.msra.mxu0 0.0
      %568 = vmatprep.subr.mxu0 0.0
      %569 = vmatpush2.msra.mxu0 0.0
      %570 = vmatprep.subr.mxu0 0.0
      %571 = vmatpush2.msra.mxu0 0.0
      %572 = vmatprep.subr.mxu0 0.0
      %573 = vmatpush2.msra.mxu0 0.0
      %574 = vmatprep.subr.mxu0 0.0
      %575 = vmatpush2.msra.mxu0 0.0
      %576 = vmatprep.subr.mxu0 0.0
      %577 = vmatpush2.msra.mxu0 0.0
      %578 = vmatprep.subr.mxu0 0.0
      %579 = vmatpush2.msra.mxu0 0.0
      %580 = vmatprep.subr.mxu0 0.0
      %581 = vmatpush2.msra.mxu0 0.0
      %582 = vmatprep.subr.mxu0 0.0
      %583 = vmatpush2.msra.mxu0 0.0
      %584 = vmatprep.subr.mxu0 0.0
      %585 = vmatpush2.msra.mxu0 0.0
      %586 = vmatprep.subr.mxu0 0.0
      %587 = vmatpush2.msra.mxu0 0.0
      %588 = vmatprep.subr.mxu0 0.0
      %589 = vmatpush2.msra.mxu0 0.0
      %590 = vmatprep.mubr.f32.mxu0 0.0
      %v591 = vand.u32 %v219, 4294901760
      %v592 = vsub.f32 %v219, %v591
      %v593 = vand.u32 %v592, 4294901760
      %594 = vmatmul.mubr.f32.gmra.mxu0 %v593
      %v595 = vpop.f32.mrf.mxu0
      %v596 = vadd.f32 %v501, %v595
      %v597 = vpop.f32.mrf.mxu0
      %598 = vmatprep.mubr.f32.mxu0 0.0
      %v599 = vand.u32 %v222, 4294901760
      %v600 = vsub.f32 %v222, %v599
      %v601 = vand.u32 %v600, 4294901760
      %602 = vmatmul.mubr.f32.gmra.mxu0 %v601
      %v603 = vpop.f32.mrf.mxu0
      %v604 = vadd.f32 %v508, %v603
      %v605 = vpop.f32.mrf.mxu0
      %606 = vmatprep.mubr.f32.mxu0 0.0
      %v607 = vand.u32 %v225, 4294901760
      %v608 = vsub.f32 %v225, %v607
      %v609 = vand.u32 %v608, 4294901760
      %610 = vmatmul.mubr.f32.gmra.mxu0 %v609
      %v611 = vpop.f32.mrf.mxu0
      %v612 = vadd.f32 %v515, %v611
      %v613 = vpop.f32.mrf.mxu0
      %614 = vmatprep.mubr.f32.mxu0 0.0
      %v615 = vand.u32 %v228, 4294901760
      %v616 = vsub.f32 %v228, %v615
      %v617 = vand.u32 %v616, 4294901760
      %618 = vmatmul.mubr.f32.gmra.mxu0 %v617
      %v619 = vpop.f32.mrf.mxu0
      %v620 = vadd.f32 %v522, %v619
      %v621 = vpop.f32.mrf.mxu0
      %622 = vdwg.mxu0
      %623 = vmatprep.subr.mxu0 0.0
      %624 = vmatpush1.msra.mxu0 0.0
      %625 = vmatprep.subr.mxu0 0.0
      %626 = vmatpush1.msra.mxu0 0.0
      %627 = vmatprep.subr.mxu0 0.0
      %628 = vmatpush1.msra.mxu0 0.0
      %629 = vmatprep.subr.mxu0 0.0
      %630 = vmatpush1.msra.mxu0 0.0
      %631 = vmatprep.subr.mxu0 0.0
      %632 = vmatpush1.msra.mxu0 0.0
      %633 = vmatprep.subr.mxu0 0.0
      %634 = vmatpush1.msra.mxu0 0.0
      %635 = vmatprep.subr.mxu0 0.0
      %636 = vmatpush1.msra.mxu0 0.0
      %637 = vmatprep.subr.mxu0 0.0
      %638 = vmatpush1.msra.mxu0 0.0
      %639 = vmatprep.subr.mxu0 0.0
      %640 = vmatpush1.msra.mxu0 0.0
      %641 = vmatprep.subr.mxu0 0.0
      %642 = vmatpush1.msra.mxu0 0.0
      %643 = vmatprep.subr.mxu0 0.0
      %644 = vmatpush1.msra.mxu0 0.0
      %645 = vmatprep.subr.mxu0 0.0
      %646 = vmatpush1.msra.mxu0 0.0
      %647 = vmatprep.subr.mxu0 0.0
      %648 = vmatpush1.msra.mxu0 0.0
      %649 = vmatprep.subr.mxu0 0.0
      %650 = vmatpush1.msra.mxu0 0.0
      %651 = vmatprep.subr.mxu0 0.0
      %652 = vmatpush1.msra.mxu0 0.0
      %653 = vmatprep.subr.mxu0 0.0
      %v654 = vand.u32 %v216, 4294901760
      %v655 = vsub.f32 %v216, %v654
      %v656 = vand.u32 %v655, 4294901760
      %657 = vmatpush1.msra.mxu0 %v656
      %658 = vmatprep.subr.mxu0 0.0
      %659 = vmatpush2.msra.mxu0 0.0
      %660 = vmatprep.subr.mxu0 0.0
      %661 = vmatpush2.msra.mxu0 0.0
      %662 = vmatprep.subr.mxu0 0.0
      %663 = vmatpush2.msra.mxu0 0.0
      %664 = vmatprep.subr.mxu0 0.0
      %665 = vmatpush2.msra.mxu0 0.0
      %666 = vmatprep.subr.mxu0 0.0
      %667 = vmatpush2.msra.mxu0 0.0
      %668 = vmatprep.subr.mxu0 0.0
      %669 = vmatpush2.msra.mxu0 0.0
      %670 = vmatprep.subr.mxu0 0.0
      %671 = vmatpush2.msra.mxu0 0.0
      %672 = vmatprep.subr.mxu0 0.0
      %673 = vmatpush2.msra.mxu0 0.0
      %674 = vmatprep.subr.mxu0 0.0
      %675 = vmatpush2.msra.mxu0 0.0
      %676 = vmatprep.subr.mxu0 0.0
      %677 = vmatpush2.msra.mxu0 0.0
      %678 = vmatprep.subr.mxu0 0.0
      %679 = vmatpush2.msra.mxu0 0.0
      %680 = vmatprep.subr.mxu0 0.0
      %681 = vmatpush2.msra.mxu0 0.0
      %682 = vmatprep.subr.mxu0 0.0
      %683 = vmatpush2.msra.mxu0 0.0
      %684 = vmatprep.subr.mxu0 0.0
      %685 = vmatpush2.msra.mxu0 0.0
      %686 = vmatprep.subr.mxu0 0.0
      %687 = vmatpush2.msra.mxu0 0.0
      %688 = vmatprep.subr.mxu0 0.0
      %689 = vmatpush2.msra.mxu0 0.0
      %690 = vmatprep.mubr.f32.mxu0 0.0
      %v691 = vand.u32 %v219, 4294901760
      %692 = vmatmul.mubr.f32.gmra.mxu0 %v691
      %v693 = vpop.f32.mrf.mxu0
      %v694 = vadd.f32 %v596, %v693
      %v695 = vpop.f32.mrf.mxu0
      %696 = vmatprep.mubr.f32.mxu0 0.0
      %v697 = vand.u32 %v222, 4294901760
      %698 = vmatmul.mubr.f32.gmra.mxu0 %v697
      %v699 = vpop.f32.mrf.mxu0
      %v700 = vadd.f32 %v604, %v699
      %v701 = vpop.f32.mrf.mxu0
      %702 = vmatprep.mubr.f32.mxu0 0.0
      %v703 = vand.u32 %v225, 4294901760
      %704 = vmatmul.mubr.f32.gmra.mxu0 %v703
      %v705 = vpop.f32.mrf.mxu0
      %v706 = vadd.f32 %v612, %v705
      %v707 = vpop.f32.mrf.mxu0
      %708 = vmatprep.mubr.f32.mxu0 0.0
      %v709 = vand.u32 %v228, 4294901760
      %710 = vmatmul.mubr.f32.gmra.mxu0 %v709
      %v711 = vpop.f32.mrf.mxu0
      %v712 = vadd.f32 %v620, %v711
      %v713 = vpop.f32.mrf.mxu0
      %714 = vdwg.mxu0
      %715 = vmatprep.subr.mxu0 0.0
      %716 = vmatpush1.msra.mxu0 0.0
      %717 = vmatprep.subr.mxu0 0.0
      %718 = vmatpush1.msra.mxu0 0.0
      %719 = vmatprep.subr.mxu0 0.0
      %720 = vmatpush1.msra.mxu0 0.0
      %721 = vmatprep.subr.mxu0 0.0
      %722 = vmatpush1.msra.mxu0 0.0
      %723 = vmatprep.subr.mxu0 0.0
      %724 = vmatpush1.msra.mxu0 0.0
      %725 = vmatprep.subr.mxu0 0.0
      %726 = vmatpush1.msra.mxu0 0.0
      %727 = vmatprep.subr.mxu0 0.0
      %728 = vmatpush1.msra.mxu0 0.0
      %729 = vmatprep.subr.mxu0 0.0
      %730 = vmatpush1.msra.mxu0 0.0
      %731 = vmatprep.subr.mxu0 0.0
      %732 = vmatpush1.msra.mxu0 0.0
      %733 = vmatprep.subr.mxu0 0.0
      %734 = vmatpush1.msra.mxu0 0.0
      %735 = vmatprep.subr.mxu0 0.0
      %736 = vmatpush1.msra.mxu0 0.0
      %737 = vmatprep.subr.mxu0 0.0
      %738 = vmatpush1.msra.mxu0 0.0
      %739 = vmatprep.subr.mxu0 0.0
      %740 = vmatpush1.msra.mxu0 0.0
      %741 = vmatprep.subr.mxu0 0.0
      %742 = vmatpush1.msra.mxu0 0.0
      %743 = vmatprep.subr.mxu0 0.0
      %744 = vmatpush1.msra.mxu0 0.0
      %745 = vmatprep.subr.mxu0 0.0
      %v746 = vand.u32 %v216, 4294901760
      %747 = vmatpush1.msra.mxu0 %v746
      %748 = vmatprep.subr.mxu0 0.0
      %749 = vmatpush2.msra.mxu0 0.0
      %750 = vmatprep.subr.mxu0 0.0
      %751 = vmatpush2.msra.mxu0 0.0
      %752 = vmatprep.subr.mxu0 0.0
      %753 = vmatpush2.msra.mxu0 0.0
      %754 = vmatprep.subr.mxu0 0.0
      %755 = vmatpush2.msra.mxu0 0.0
      %756 = vmatprep.subr.mxu0 0.0
      %757 = vmatpush2.msra.mxu0 0.0
      %758 = vmatprep.subr.mxu0 0.0
      %759 = vmatpush2.msra.mxu0 0.0
      %760 = vmatprep.subr.mxu0 0.0
      %761 = vmatpush2.msra.mxu0 0.0
      %762 = vmatprep.subr.mxu0 0.0
      %763 = vmatpush2.msra.mxu0 0.0
      %764 = vmatprep.subr.mxu0 0.0
      %765 = vmatpush2.msra.mxu0 0.0
      %766 = vmatprep.subr.mxu0 0.0
      %767 = vmatpush2.msra.mxu0 0.0
      %768 = vmatprep.subr.mxu0 0.0
      %769 = vmatpush2.msra.mxu0 0.0
      %770 = vmatprep.subr.mxu0 0.0
      %771 = vmatpush2.msra.mxu0 0.0
      %772 = vmatprep.subr.mxu0 0.0
      %773 = vmatpush2.msra.mxu0 0.0
      %774 = vmatprep.subr.mxu0 0.0
      %775 = vmatpush2.msra.mxu0 0.0
      %776 = vmatprep.subr.mxu0 0.0
      %777 = vmatpush2.msra.mxu0 0.0
      %778 = vmatprep.subr.mxu0 0.0
      %779 = vmatpush2.msra.mxu0 0.0
      %780 = vmatprep.mubr.f32.mxu0 0.0
      %v781 = vand.u32 %v219, 4294901760
      %782 = vmatmul.mubr.f32.gmra.mxu0 %v781
      %v783 = vpop.f32.mrf.mxu0
      %v784 = vadd.f32 %v694, %v783
      %v785 = vpop.f32.mrf.mxu0
      %786 = vmatprep.mubr.f32.mxu0 0.0
      %v787 = vand.u32 %v222, 4294901760
      %788 = vmatmul.mubr.f32.gmra.mxu0 %v787
      %v789 = vpop.f32.mrf.mxu0
      %v790 = vadd.f32 %v700, %v789
      %v791 = vpop.f32.mrf.mxu0
      %792 = vmatprep.mubr.f32.mxu0 0.0
      %v793 = vand.u32 %v225, 4294901760
      %794 = vmatmul.mubr.f32.gmra.mxu0 %v793
      %v795 = vpop.f32.mrf.mxu0
      %v796 = vadd.f32 %v706, %v795
      %v797 = vpop.f32.mrf.mxu0
      %798 = vmatprep.mubr.f32.mxu0 0.0
      %v799 = vand.u32 %v228, 4294901760
      %800 = vmatmul.mubr.f32.gmra.mxu0 %v799
      %v801 = vpop.f32.mrf.mxu0
      %v802 = vadd.f32 %v712, %v801
      %v803 = vpop.f32.mrf.mxu0
      %804 = vdwg.mxu0
      %v805 = vmul.f32 %v784, 1.442695
      %v806 = vpow.pop %v805
      %v807 = vmul.f32 %v790, 1.442695
      %v808 = vpow.pop %v807
      %v809 = vmul.f32 %v796, 1.442695
      %v810 = vpow.pop %v809
      %v811 = vmul.f32 %v802, 1.442695
      %v812 = vpow.pop %v811
      %v813 = vmin.f32 %v806, 0.99
      %v814 = vmin.f32 %v808, 0.99
      %v815 = vmin.f32 %v810, 0.99
      %v816 = vmin.f32 %v812, 0.99
      %817 = vst [vmem:[%s210] sm:$0xff] %v813
      %818 = vst [vmem:[%s210 + $0x8] sm:$0xff] %v814
      %819 = vst [vmem:[%s210 + $0x10] sm:$0xff] %v815
      %820 = vst [vmem:[%s210 + $0x18] sm:$0xff] %v816
      %s821 = smul.u32 4, %s19
      %p822 = scmp.lt.s32.totalorder %s18, 1
      %s823 = scalar_select %p822, %s18, 1
      %p824 = scmp.lt.s32.totalorder %s821, 15
      %s825 = scalar_select %p824, %s821, 15
      %p826 = scmp.lt.s32.totalorder %s20, 0
      %s827 = scalar_select %p826, %s20, 0
      %s828 = sadd.s32 %s827, %s825
      %s829 = smul.addr %s823, 16
      %s830 = sadd.s32 %s828, %s829
      %s831 = smul.addr %s830, 8
      %s832 = scalar_lea.vmem %s2, %s831
      // Predicated region
      $region29: #{forward.1} parent=27 // pred_check
        %p833 = pneg %p108
      $region30: #{forward.1} parent=27 // pred_check_branch
        %835 = sbr.rel (%p833) target = $region32
      $region31: #{forward.1} parent=27 // pred_region
        %s836 = smul.u32 4, %s19
      $region32: #{forward.1} parent=27 // pred_fallthru
        _
    $region28: #{forward.1} parent=5 // pred_fallthru
      _
    %p837 = scmp.le.s32.totalorder 2, %s8
    // Predicated region
    $region33: #{forward.1} parent=5 // pred_check
      %p838 = pneg %p837
    $region34: #{forward.1} parent=5 // pred_check_branch
      %840 = sbr.rel (%p838) target = $region36
    $region35: #{forward.1} parent=5 // pred_region
      %s841 = ssub.s32 %s8, 2
      // Predicated region
      $region37: #{forward.1} parent=35 // pred_check
        %p842 = pneg %p114
      $region38: #{forward.1} parent=35 // pred_check_branch
        %844 = sbr.rel (%p842) target = $region40
      $region39: #{forward.1} parent=35 // pred_region
        %s845 = smul.u32 4, %s22
        %p846 = scmp.lt.s32.totalorder %s21, 1
        %s847 = scalar_select %p846, %s21, 1
        %p848 = scmp.lt.s32.totalorder %s845, 15
        %s849 = scalar_select %p848, %s845, 15
        %p850 = scmp.lt.s32.totalorder %s23, 0
        %s851 = scalar_select %p850, %s23, 0
        %s852 = sadd.s32 %s851, %s849
        %s853 = smul.addr %s847, 16
        %s854 = sadd.s32 %s852, %s853
        %s855 = smul.addr %s854, 8
        %s856 = scalar_lea.vmem %s2, %s855
      $region40: #{forward.1} parent=35 // pred_fallthru
        _
    $region36: #{forward.1} parent=5 // pred_fallthru
      _
  $region6: #{forward.1} parent=0 // loop_footer
    %s12 = sadd.s32 1, %s8
  $region7: #{forward.1} parent=0 // loop_footer_branch
    %7 = sbr.rel target = $region3
  $region8: #{forward.1} parent=0 // loop_exit
    _

</llo_original>
